<compile_context>
chip_gen: v5e
topology: v5e:2x2
jax: 0.10.0
libtpu: 0.0.40
codegen_flags: <defaults>
</compile_context>

<pallas_src>
import functools

import jax
import jax.numpy as jnp
from jax import lax
from jax.experimental import pallas as pl
from jax.experimental.pallas import tpu as pltpu


def _round_up(x, m):
    return (x + m - 1) // m * m


def _vmem_capacity_bytes():
    try:
        return int(pltpu.get_tpu_info().vmem_capacity_bytes)
    except Exception:
        return 64 << 20  # conservative: v7x per-TensorCore VMEM


# --------------------------------------------------------------- kernels ---

def _soft_ce_kernel_rows(x_ref, t_ref, acc_ref, *, ignore_value, rows_total,
                         tiles_per_p, block_rows):
    """4-D path: blocks (1, C, Tr, 128); C-reduce = slab-wise VPU adds."""
    ti = pl.program_id(2)

    @pl.when(ti == 0)
    def _():
        acc_ref[...] = jnp.zeros_like(acc_ref)

    x = x_ref[...].astype(jnp.float32)      # (1, C, Tr, 128)
    tgt = t_ref[...].astype(jnp.float32)    # (1, C, Tr, 128)

    # Validity of each (row, lane) position: covers the ragged tail of R and
    # fully-clamped duplicate tiles on the last parallel split.
    tile = pl.program_id(1) * tiles_per_p + ti
    row = lax.broadcasted_iota(jnp.int32, (1, 1, block_rows, 128), 2)
    valid = (tile * block_rows + row) < rows_total                     # (1,1,Tr,128)

    # Stable log-sum-exp over channels; -log_softmax(x)*t == t*(lse-x).
    m = jnp.max(x, axis=1, keepdims=True)                              # (1,1,Tr,128)
    lse = jnp.log(jnp.sum(jnp.exp(x - m), axis=1, keepdims=True)) + m  # (1,1,Tr,128)

    mask = (tgt != jnp.float32(ignore_value)) & valid                  # (1,C,Tr,128)
    vals = jnp.where(mask, tgt * (lse - x), jnp.float32(0.0))

    # Packed accumulator: rows [0,Tr) = masked sum, rows [Tr,2Tr) = count.
    acc_ref[0, 0, 0:block_rows, :] += jnp.sum(vals, axis=1)[0]
    acc_ref[0, 0, block_rows:2 * block_rows, :] += (
        jnp.sum(mask.astype(jnp.float32), axis=1)[0])


def _soft_ce_kernel_cols(x_ref, t_ref, acc_ref, *, ignore_value, cols_total,
                         tiles_per_p, block_cols):
    """3-D fallback (HW % 128 != 0): blocks (1, C, T) with lane-validity mask."""
    ti = pl.program_id(2)

    @pl.when(ti == 0)
    def _():
        acc_ref[...] = jnp.zeros_like(acc_ref)

    x = x_ref[...].astype(jnp.float32)      # (1, C, T)
    tgt = t_ref[...].astype(jnp.float32)    # (1, C, T)

    tile = pl.program_id(1) * tiles_per_p + ti
    col = lax.broadcasted_iota(jnp.int32, (1, 1, block_cols), 2)
    valid = (tile * block_cols + col) < cols_total                     # (1,1,T)

    m = jnp.max(x, axis=1, keepdims=True)                              # (1,1,T)
    lse = jnp.log(jnp.sum(jnp.exp(x - m), axis=1, keepdims=True)) + m

    mask = (tgt != jnp.float32(ignore_value)) & valid                  # (1,C,T)
    vals = jnp.where(mask, tgt * (lse - x), jnp.float32(0.0))

    # Packed accumulator: row 0 = masked sum, row 1 = count.
    acc_ref[0, 0, 0:1, :] += jnp.sum(vals, axis=1)
    acc_ref[0, 0, 1:2, :] += jnp.sum(mask.astype(jnp.float32), axis=1)


# --------------------------------------------------------------- wrapper ---

def soft_cross_entropy(inputs, target, ignore_index=-1):
    """inputs, target: (N, C, H, W). Returns scalar f32 loss."""
    assert inputs.shape == target.shape
    N, C, H, W = inputs.shape
    HW = H * W
    itemsize = jnp.dtype(inputs.dtype).itemsize
    sub = max(8, 32 // itemsize)          # sublane tile: 8 f32 / 16 bf16 / 32 i8

    vmem_cap = _vmem_capacity_bytes()
    # 2 inputs x 2 pipeline buffers per block, keep >=25% VMEM headroom.
    per_block_budget = min(16 << 20, (vmem_cap * 3 // 4) // 4)
    ignore_value = float(ignore_index)

    use_rows = (HW % 128 == 0)

    if use_rows:
        # ---- lane-dense 4-D path: (N, C, R, 128), blocks (1, C, Tr, 128) ----
        R = HW // 128
        x = inputs.reshape(N, C, R, 128)      # contiguous split: free
        t = target.reshape(N, C, R, 128)

        tr_max = max(1, per_block_budget // (C * 128 * itemsize))
        if R <= tr_max:
            Tr = R                            # full dim: always a legal block
        else:
            Tr = max(sub, tr_max // sub * sub)
            Tr = min(Tr, R)
        num_tiles = pl.cdiv(R, Tr)
        P = 2 if (num_tiles >= 2 and N < 8) else 1
        tiles_per_p = pl.cdiv(num_tiles, P)

        kernel = functools.partial(
            _soft_ce_kernel_rows, ignore_value=ignore_value,
            rows_total=R, tiles_per_p=tiles_per_p, block_rows=Tr)

        def in_map(n, p, ti):
            # Clamp logical tile into range; kernel fully masks duplicates.
            return (n, 0, jnp.minimum(p * tiles_per_p + ti, num_tiles - 1), 0)

        in_spec = pl.BlockSpec((1, C, Tr, 128), in_map)
        out_spec = pl.BlockSpec((1, 1, 2 * Tr, 128),
                                lambda n, p, ti: (n, p, 0, 0))
        out_shape = jax.ShapeDtypeStruct((N, P, 2 * Tr, 128), jnp.float32)

        block_bytes = C * _round_up(Tr, sub) * 128 * itemsize
        acc_bytes = _round_up(2 * Tr, 8) * 128 * 4
    else:
        # ---- 3-D fallback: (N, C, HW), blocks (1, C, T), T mult of 128 ------
        x = inputs.reshape(N, C, HW)
        t = target.reshape(N, C, HW)
        C_pad = _round_up(C, sub)

        if HW < 128:
            T = HW                            # full dim: legal block
        else:
            t_max = max(128, per_block_budget // (C_pad * itemsize) // 128 * 128)
            T = min(t_max, HW // 128 * 128)
        num_tiles = pl.cdiv(HW, T)
        P = 2 if (num_tiles >= 2 and N < 8) else 1
        tiles_per_p = pl.cdiv(num_tiles, P)

        kernel = functools.partial(
            _soft_ce_kernel_cols, ignore_value=ignore_value,
            cols_total=HW, tiles_per_p=tiles_per_p, block_cols=T)

        def in_map(n, p, ti):
            return (n, 0, jnp.minimum(p * tiles_per_p + ti, num_tiles - 1))

        in_spec = pl.BlockSpec((1, C, T), in_map)
        out_spec = pl.BlockSpec((1, 1, 2, T), lambda n, p, ti: (n, p, 0, 0))
        out_shape = jax.ShapeDtypeStruct((N, P, 2, T), jnp.float32)

        block_bytes = C_pad * T * itemsize
        acc_bytes = 8 * T * 4

    # Sublane-padded footprint: 2 inputs x 2 buffers + resident accumulator.
    vmem_need = 4 * block_bytes + 2 * acc_bytes + (2 << 20)
    vmem_limit = int(min(max(vmem_need, 32 << 20), vmem_cap * 9 // 10))

    acc = pl.pallas_call(
        kernel,
        out_shape=out_shape,
        grid=(N, P, tiles_per_p),
        in_specs=[in_spec, in_spec],
        out_specs=out_spec,
        compiler_params=pltpu.CompilerParams(
            dimension_semantics=("parallel", "parallel", "arbitrary"),
            vmem_limit_bytes=vmem_limit,
        ),
    )(x, t)

    if use_rows:
        half = acc.shape[2] // 2
        total_sum = jnp.sum(acc[:, :, :half, :])
        total_cnt = jnp.sum(acc[:, :, half:, :])
    else:
        total_sum = jnp.sum(acc[:, :, 0, :])
        total_cnt = jnp.sum(acc[:, :, 1, :])
    # NOTE: if every element == ignore_index this is 0/0 = NaN, matching
    # torch.mean over an empty selection.
    return (total_sum / total_cnt).astype(jnp.float32)


def _reference(inputs, target, ignore_index=-1):
    mask = target != ignore_index
    log_sm = jax.nn.log_softmax(inputs.astype(jnp.float32), axis=1)
    vals = -log_sm * target.astype(jnp.float32)
    return jnp.sum(jnp.where(mask, vals, 0.0)) / jnp.sum(mask)


if __name__ == "__main__":
    key = jax.random.PRNGKey(0)
    IGNORE = -1

    def make(shape, k):
        k1, k2, k3 = jax.random.split(k, 3)
        x = jax.random.normal(k1, shape, dtype=jnp.float32)
        tgt = jax.nn.softmax(jax.random.normal(k2, shape, dtype=jnp.float32),
                             axis=1)
        drop = jax.random.bernoulli(k3, p=0.05, shape=shape)
        tgt = jnp.where(drop, jnp.float32(IGNORE), tgt)
        return x, tgt

    ka, kb = jax.random.split(key)

    # Case 1: HW % 128 == 0 -> lane-dense 4-D path.
    x1, t1 = make((2, 4, 16, 16), ka)
    loss1 = jax.block_until_ready(soft_cross_entropy(x1, t1, ignore_index=IGNORE))
    ref1 = _reference(x1, t1, ignore_index=IGNORE)
    assert jnp.allclose(loss1, ref1, rtol=1e-5, atol=1e-5), (loss1, ref1)

    # Case 2: ragged HW (324) -> 3-D path, in-kernel lane mask, P=2 tile split.
    x2, t2 = make((2, 4, 18, 18), kb)
    loss2 = jax.block_until_ready(soft_cross_entropy(x2, t2, ignore_index=IGNORE))
    ref2 = _reference(x2, t2, ignore_index=IGNORE)
    assert jnp.allclose(loss2, ref2, rtol=1e-5, atol=1e-5), (loss2, ref2)

    print("KERNEL_OK")
</pallas_src>

<mosaic_0001>
module attributes {stable_mosaic.version = 11 : i64} {
  func.func @_soft_ce_kernel_rows(%arg0: i32, %arg1: i32, %arg2: i32, %arg3: memref<1x4x2x128xf32, #tpu.memory_space<vmem>>, %arg4: memref<1x4x2x128xf32, #tpu.memory_space<vmem>>, %arg5: memref<1x1x4x128xf32, #tpu.memory_space<vmem>>) attributes {dimension_semantics = [#tpu.dimension_semantics<parallel>, #tpu.dimension_semantics<parallel>, #tpu.dimension_semantics<arbitrary>], iteration_bounds = array<i64: 2, 1, 1>, scalar_prefetch = 0 : i64, scratch_operands = 0 : i64, tpu.core_type = #tpu.core_type<tc>, window_params = [{transform_indices = @transform_0, window_bounds = array<i64: 1, 4, 2, 128>}, {transform_indices = @transform_1, window_bounds = array<i64: 1, 4, 2, 128>}, {transform_indices = @transform_2, window_bounds = array<i64: 1, 1, 4, 128>}]} {
    %c0_i32 = arith.constant 0 : i32
    %0 = arith.cmpi eq, %arg2, %c0_i32 : i32
    %1 = arith.extui %0 : i1 to i32
    %c0_i32_0 = arith.constant 0 : i32
    %2 = arith.cmpi ne, %1, %c0_i32_0 : i32
    scf.if %2 {
      %cst_29 = arith.constant 0.000000e+00 : f32
      %49 = vector.broadcast %cst_29 : f32 to vector<1x1x4x128xf32>
      %c0_30 = arith.constant 0 : index
      %c0_31 = arith.constant 0 : index
      %c0_32 = arith.constant 0 : index
      %c0_33 = arith.constant 0 : index
      %50 = vector.load %arg5[%c0_30, %c0_31, %c0_32, %c0_33] : memref<1x1x4x128xf32, #tpu.memory_space<vmem>>, vector<1x1x4x128xf32>
      tpu.vector_store %arg5[%c0_30, %c0_31, %c0_32, %c0_33], %49 {strides = array<i32>} : memref<1x1x4x128xf32, #tpu.memory_space<vmem>>, vector<1x1x4x128xf32>,
    } else {
    }
    %c0 = arith.constant 0 : index
    %c0_1 = arith.constant 0 : index
    %c0_2 = arith.constant 0 : index
    %c0_3 = arith.constant 0 : index
    %3 = vector.load %arg3[%c0, %c0_1, %c0_2, %c0_3] : memref<1x4x2x128xf32, #tpu.memory_space<vmem>>, vector<1x4x2x128xf32>
    %c0_4 = arith.constant 0 : index
    %c0_5 = arith.constant 0 : index
    %c0_6 = arith.constant 0 : index
    %c0_7 = arith.constant 0 : index
    %4 = vector.load %arg4[%c0_4, %c0_5, %c0_6, %c0_7] : memref<1x4x2x128xf32, #tpu.memory_space<vmem>>, vector<1x4x2x128xf32>
    %c1_i32 = arith.constant 1 : i32
    %5 = arith.muli %arg1, %c1_i32 : i32
    %6 = arith.addi %5, %arg2 : i32
    %7 = tpu.iota {dimensions = array<i32: 2>} : vector<1x1x2x128xi32>
    %c2_i32 = arith.constant 2 : i32
    %8 = arith.muli %6, %c2_i32 : i32
    %9 = vector.broadcast %8 : i32 to vector<1x1x2x128xi32>
    %10 = arith.addi %9, %7 : vector<1x1x2x128xi32>
    %c2_i32_8 = arith.constant 2 : i32
    %11 = vector.broadcast %c2_i32_8 : i32 to vector<1x1x2x128xi32>
    %12 = arith.cmpi slt, %10, %11 : vector<1x1x2x128xi32>
    %cst = arith.constant dense<0xFF800000> : vector<1x2x128xf32>
    %13 = vector.multi_reduction <maximumf>, %3, %cst [1] : vector<1x4x2x128xf32> to vector<1x2x128xf32>
    %14 = vector.shape_cast %13 : vector<1x2x128xf32> to vector<1x1x2x128xf32>
    %15 = vector.broadcast %14 : vector<1x1x2x128xf32> to vector<1x4x2x128xf32>
    %16 = arith.subf %3, %15 : vector<1x4x2x128xf32>
    %17 = math.exp %16 : vector<1x4x2x128xf32>
    %cst_9 = arith.constant dense<0.000000e+00> : vector<1x2x128xf32>
    %18 = vector.multi_reduction <add>, %17, %cst_9 [1] : vector<1x4x2x128xf32> to vector<1x2x128xf32>
    %19 = vector.shape_cast %18 : vector<1x2x128xf32> to vector<1x1x2x128xf32>
    %20 = math.log %19 : vector<1x1x2x128xf32>
    %21 = arith.addf %20, %14 : vector<1x1x2x128xf32>
    %cst_10 = arith.constant -1.000000e+00 : f32
    %22 = vector.broadcast %cst_10 : f32 to vector<1x4x2x128xf32>
    %23 = arith.cmpf one, %4, %22 : vector<1x4x2x128xf32>
    %24 = vector.broadcast %12 : vector<1x1x2x128xi1> to vector<1x4x2x128xi1>
    %25 = arith.andi %23, %24 : vector<1x4x2x128xi1>
    %26 = vector.broadcast %21 : vector<1x1x2x128xf32> to vector<1x4x2x128xf32>
    %27 = arith.subf %26, %3 : vector<1x4x2x128xf32>
    %28 = arith.mulf %4, %27 : vector<1x4x2x128xf32>
    %cst_11 = arith.constant 0.000000e+00 : f32
    %29 = vector.broadcast %cst_11 : f32 to vector<1x4x2x128xf32>
    %30 = arith.select %25, %28, %29 : vector<1x4x2x128xi1>, vector<1x4x2x128xf32>
    %c0_12 = arith.constant 0 : index
    %c0_13 = arith.constant 0 : index
    %c0_14 = arith.constant 0 : index
    %c0_15 = arith.constant 0 : index
    %31 = vector.load %arg5[%c0_12, %c0_13, %c0_14, %c0_15] : memref<1x1x4x128xf32, #tpu.memory_space<vmem>>, vector<1x1x2x128xf32>
    %32 = vector.shape_cast %31 : vector<1x1x2x128xf32> to vector<2x128xf32>
    %cst_16 = arith.constant dense<0.000000e+00> : vector<1x2x128xf32>
    %33 = vector.multi_reduction <add>, %30, %cst_16 [1] : vector<1x4x2x128xf32> to vector<1x2x128xf32>
    %34 = vector.shape_cast %33 : vector<1x2x128xf32> to vector<2x128xf32>
    %35 = arith.addf %32, %34 : vector<2x128xf32>
    %c0_17 = arith.constant 0 : index
    %c0_18 = arith.constant 0 : index
    %c0_19 = arith.constant 0 : index
    %c0_20 = arith.constant 0 : index
    %36 = vector.load %arg5[%c0_17, %c0_18, %c0_19, %c0_20] : memref<1x1x4x128xf32, #tpu.memory_space<vmem>>, vector<1x1x2x128xf32>
    %37 = vector.shape_cast %36 : vector<1x1x2x128xf32> to vector<2x128xf32>
    %38 = vector.shape_cast %35 : vector<2x128xf32> to vector<1x1x2x128xf32>
    tpu.vector_store %arg5[%c0_17, %c0_18, %c0_19, %c0_20], %38 {strides = array<i32>} : memref<1x1x4x128xf32, #tpu.memory_space<vmem>>, vector<1x1x2x128xf32>,
    %c0_21 = arith.constant 0 : index
    %c0_22 = arith.constant 0 : index
    %c2 = arith.constant 2 : index
    %c0_23 = arith.constant 0 : index
    %39 = vector.load %arg5[%c0_21, %c0_22, %c2, %c0_23] : memref<1x1x4x128xf32, #tpu.memory_space<vmem>>, vector<1x1x2x128xf32>
    %40 = vector.shape_cast %39 : vector<1x1x2x128xf32> to vector<2x128xf32>
    %41 = arith.extui %25 : vector<1x4x2x128xi1> to vector<1x4x2x128xi32>
    %42 = arith.sitofp %41 : vector<1x4x2x128xi32> to vector<1x4x2x128xf32>
    %cst_24 = arith.constant dense<0.000000e+00> : vector<1x2x128xf32>
    %43 = vector.multi_reduction <add>, %42, %cst_24 [1] : vector<1x4x2x128xf32> to vector<1x2x128xf32>
    %44 = vector.shape_cast %43 : vector<1x2x128xf32> to vector<2x128xf32>
    %45 = arith.addf %40, %44 : vector<2x128xf32>
    %c0_25 = arith.constant 0 : index
    %c0_26 = arith.constant 0 : index
    %c2_27 = arith.constant 2 : index
    %c0_28 = arith.constant 0 : index
    %46 = vector.load %arg5[%c0_25, %c0_26, %c2_27, %c0_28] : memref<1x1x4x128xf32, #tpu.memory_space<vmem>>, vector<1x1x2x128xf32>
    %47 = vector.shape_cast %46 : vector<1x1x2x128xf32> to vector<2x128xf32>
    %48 = vector.shape_cast %45 : vector<2x128xf32> to vector<1x1x2x128xf32>
    tpu.vector_store %arg5[%c0_25, %c0_26, %c2_27, %c0_28], %48 {strides = array<i32>} : memref<1x1x4x128xf32, #tpu.memory_space<vmem>>, vector<1x1x2x128xf32>,
    return
  }
  func.func @transform_0(%arg0: i32, %arg1: i32, %arg2: i32) -> (i32, i32, i32, i32) {
    %c1_i32 = arith.constant 1 : i32
    %0 = arith.muli %arg1, %c1_i32 : i32
    %1 = arith.addi %0, %arg2 : i32
    %c0_i32 = arith.constant 0 : i32
    %2 = arith.minsi %1, %c0_i32 : i32
    %c0_i32_0 = arith.constant 0 : i32
    %c0_i32_1 = arith.constant 0 : i32
    %c0_i32_2 = arith.constant 0 : i32
    return %arg0, %c0_i32_0, %2, %c0_i32_1 : i32, i32, i32, i32
  }
  func.func @transform_1(%arg0: i32, %arg1: i32, %arg2: i32) -> (i32, i32, i32, i32) {
    %c1_i32 = arith.constant 1 : i32
    %0 = arith.muli %arg1, %c1_i32 : i32
    %1 = arith.addi %0, %arg2 : i32
    %c0_i32 = arith.constant 0 : i32
    %2 = arith.minsi %1, %c0_i32 : i32
    %c0_i32_0 = arith.constant 0 : i32
    %c0_i32_1 = arith.constant 0 : i32
    %c0_i32_2 = arith.constant 0 : i32
    return %arg0, %c0_i32_0, %2, %c0_i32_1 : i32, i32, i32, i32
  }
  func.func @transform_2(%arg0: i32, %arg1: i32, %arg2: i32) -> (i32, i32, i32, i32) {
    %c0_i32 = arith.constant 0 : i32
    %c0_i32_0 = arith.constant 0 : i32
    %c0_i32_1 = arith.constant 0 : i32
    return %arg0, %arg1, %c0_i32, %c0_i32_0 : i32, i32, i32, i32
  }
}

</mosaic_0001>

<llo_original>
// kernel: tpu_custom_call.1
$region0: #{tpu_custom_call.1}
  #allocation0 [shape = 'u32[]', space=smem, size = 0x4, offset = 0x4, fixed_abs, tag = 'smem constant byte address 0x4 - core index']
  #allocation1 [shape = 'u32[72,128]{1,0:T(1,128)}', space=vmem, size = 0x9000, scoped, tag = 'internal scratch']
  %s0 = inlined_call_operand.hbm [shape: f32[2,4,2,128], index: 0, kind: input, shape index: {}]
  %s1 = inlined_call_operand.hbm [shape: f32[2,4,2,128], index: 1, kind: input, shape index: {}]
  %s2 = inlined_call_operand.hbm [shape: f32[2,1,4,128], index: 2, kind: output, shape index: {}]
  %s3 = sld [smem:[#allocation0]]
  $region53: #{tpu_custom_call.1} parent=0
    _
  %s5 = ssub.s32 1, %s3
  %s6 = scalar_select 0, %s5, %s3
  $region1: #{tpu_custom_call.1} parent=0
    #allocation2 [shape = 'u8[8192]{0}', space=vmem, size = 0x2000, scoped, tag = 'input window, operand 0']
    #allocation3 [shape = 's32[2]{0}', space=sflag, size = 0x8, scoped, tag = 'scoped memory for tpu_custom_call.1']
    #allocation4 [shape = 's32[2]{0}', space=sflag, size = 0x8, scoped, tag = 'scoped memory for tpu_custom_call.1']
    #allocation5 [shape = 'u8[8192]{0}', space=vmem, size = 0x2000, scoped, tag = 'input window, operand 1']
    #allocation6 [shape = 's32[2]{0}', space=sflag, size = 0x8, scoped, tag = 'scoped memory for tpu_custom_call.1']
    #allocation7 [shape = 'u8[4096]{0}', space=vmem, size = 0x1000, scoped, tag = 'output window, operand 0']
    %7 = vsyncpa [#allocation3], 0
    %s8 = scalar_lea.sflag [#allocation3], 1
    %9 = vsyncpa %s8, 0
    %10 = vsyncpa [#allocation6], 0
    %s11 = scalar_lea.sflag [#allocation6], 1
    %12 = vsyncpa %s11, 0
    %13 = vsyncpa [#allocation4], 0
    %s14 = scalar_lea.sflag [#allocation4], 1
    %15 = vsyncpa %s14, 0
    loop: start=0, step=1, limit=4
    $region2: #{tpu_custom_call.1} parent=1 // loop_pre_header
      _
    $region3: #{tpu_custom_call.1} parent=1 // loop_header
      %s17 = sphi 0, %s21
      %p18 = scmp.ge.s32.totalorder %s17, 4
      %s24 = sphi 0, %s43
      %s25 = sphi 0, %s39
      %s26 = sphi 0, %s35
      %s27 = sphi 0, %s24
      %s28 = sphi 0, %s25
      %s29 = sphi 0, %s26
      %s30 = sphi 0, %s27
      %s31 = sphi 0, %s28
      %s32 = sphi 0, %s29
      %s54 = sphi 0, %s56
      %s57 = sphi 0, %s54
      %s58 = sphi 0, %s57
      %s74 = sphi 0, %s58
      %s88 = sphi 0, %s90
      %s91 = sphi 0, %s88
      %s92 = sphi 0, %s91
      %s108 = sphi 0, %s92
      %s116 = sphi 0, %s118
      %s119 = sphi 0, %s116
      %s120 = sphi 0, %s119
      %s136 = sphi 0, %s120
    $region4: #{tpu_custom_call.1} parent=1 // loop_header_branch
      %20 = sbr.rel (%p18) target = $region8
    $region5: #{tpu_custom_call.1} parent=1 // loop_body
      %s22 = ssub.s32 %s17, 1
      %s23 = ssub.s32 %s17, 2
      %s33 = sadd.s32 1, %s26
      %p34 = scmp.ge.s32.totalorder %s33, 1
      %s35 = scalar_select %p34, 0, %s33
      %s36 = sadd.s32 1, %s25
      %s37 = scalar_select %p34, %s36, %s25
      %p38 = scmp.ge.s32.totalorder %s37, 1
      %s39 = scalar_select %p38, 0, %s37
      %s40 = sadd.s32 1, %s24
      %s41 = scalar_select %p38, %s40, %s24
      %p42 = scmp.ge.s32.totalorder %s41, 2
      %s43 = scalar_select %p42, 0, %s41
      %s44 = sadd.s32 %s25, %s26
      %p45 = scmp.lt.s32.totalorder %s44, 0
      %s46 = scalar_select %p45, %s44, 0
      %s47 = sadd.s32 %s39, %s35
      %p48 = scmp.lt.s32.totalorder %s47, 0
      %s49 = scalar_select %p48, %s47, 0
      %s50 = ssub.s32 %s24, %s43
      %s51 = ssub.s32 %s46, %s49
      %s52 = sor.u32 %s50, %s51
      %p53 = scmp.eq.s32.totalorder %s52, 0
      %s55 = sadd.s32 %s54, 1
      %s56 = scalar_select %p53, %s54, %s55
      %p59 = pneg %p53
      %p60 = scmp.eq.s32.totalorder %s17, 1
      %p61 = por %p59, %p60
      %p62 = scmp.ne.s32.totalorder %s54, %s57
      %p63 = scmp.eq.s32.totalorder %s17, 0
      %p64 = por %p62, %p63
      %p65 = scmp.ne.s32.totalorder %s54, %s57
      %p66 = scmp.eq.s32.totalorder %s22, 1
      %p67 = por %p65, %p66
      %p68 = scmp.ne.s32.totalorder %s57, %s58
      %p69 = scmp.eq.s32.totalorder %s22, 0
      %p70 = por %p68, %p69
      %p71 = scmp.ne.s32.totalorder %s57, %s58
      %p72 = scmp.eq.s32.totalorder %s23, 1
      %p73 = por %p71, %p72
      %p75 = scmp.ne.s32.totalorder %s58, %s74
      %p76 = scmp.eq.s32.totalorder %s23, 0
      %p77 = por %p75, %p76
      %s78 = sadd.s32 %s25, %s26
      %p79 = scmp.lt.s32.totalorder %s78, 0
      %s80 = scalar_select %p79, %s78, 0
      %s81 = sadd.s32 %s39, %s35
      %p82 = scmp.lt.s32.totalorder %s81, 0
      %s83 = scalar_select %p82, %s81, 0
      %s84 = ssub.s32 %s24, %s43
      %s85 = ssub.s32 %s80, %s83
      %s86 = sor.u32 %s84, %s85
      %p87 = scmp.eq.s32.totalorder %s86, 0
      %s89 = sadd.s32 %s88, 1
      %s90 = scalar_select %p87, %s88, %s89
      %p93 = pneg %p87
      %p94 = scmp.eq.s32.totalorder %s17, 1
      %p95 = por %p93, %p94
      %p96 = scmp.ne.s32.totalorder %s88, %s91
      %p97 = scmp.eq.s32.totalorder %s17, 0
      %p98 = por %p96, %p97
      %p99 = scmp.ne.s32.totalorder %s88, %s91
      %p100 = scmp.eq.s32.totalorder %s22, 1
      %p101 = por %p99, %p100
      %p102 = scmp.ne.s32.totalorder %s91, %s92
      %p103 = scmp.eq.s32.totalorder %s22, 0
      %p104 = por %p102, %p103
      %p105 = scmp.ne.s32.totalorder %s91, %s92
      %p106 = scmp.eq.s32.totalorder %s23, 1
      %p107 = por %p105, %p106
      %p109 = scmp.ne.s32.totalorder %s92, %s108
      %p110 = scmp.eq.s32.totalorder %s23, 0
      %p111 = por %p109, %p110
      %s112 = ssub.s32 %s24, %s43
      %s113 = ssub.s32 %s25, %s39
      %s114 = sor.u32 %s112, %s113
      %p115 = scmp.eq.s32.totalorder %s114, 0
      %s117 = sadd.s32 %s116, 1
      %s118 = scalar_select %p115, %s116, %s117
      %p121 = pneg %p115
      %p122 = scmp.eq.s32.totalorder %s17, 1
      %p123 = por %p121, %p122
      %p124 = scmp.ne.s32.totalorder %s116, %s119
      %p125 = scmp.eq.s32.totalorder %s17, 0
      %p126 = por %p124, %p125
      %p127 = scmp.ne.s32.totalorder %s116, %s119
      %p128 = scmp.eq.s32.totalorder %s22, 1
      %p129 = por %p127, %p128
      %p130 = scmp.ne.s32.totalorder %s119, %s120
      %p131 = scmp.eq.s32.totalorder %s22, 0
      %p132 = por %p130, %p131
      %p133 = scmp.ne.s32.totalorder %s119, %s120
      %p134 = scmp.eq.s32.totalorder %s23, 1
      %p135 = por %p133, %p134
      %p137 = scmp.ne.s32.totalorder %s120, %s136
      %p138 = scmp.eq.s32.totalorder %s23, 0
      %p139 = por %p137, %p138
      %p140 = scmp.le.s32.totalorder 1, %s17
      %p141 = scmp.lt.s32.totalorder %s17, 3
      %p142 = pnand %p140, %p141
      %p143 = pneg %p142
      // Predicated region
      $region9: #{tpu_custom_call.1} parent=5 // pred_check
        _
      $region10: #{tpu_custom_call.1} parent=5 // pred_check_branch
        %145 = sbr.rel (%p142) target = $region12
      $region11: #{tpu_custom_call.1} parent=5 // pred_region
        %s146 = ssub.s32 %s17, 1
      $region12: #{tpu_custom_call.1} parent=5 // pred_fallthru
        _
      %p147 = scmp.lt.s32.totalorder %s17, 2
      // Predicated region
      $region13: #{tpu_custom_call.1} parent=5 // pred_check
        %p148 = pneg %p147
      $region14: #{tpu_custom_call.1} parent=5 // pred_check_branch
        %150 = sbr.rel (%p148) target = $region16
      $region15: #{tpu_custom_call.1} parent=5 // pred_region
        // Predicated region
        $region17: #{tpu_custom_call.1} parent=15 // pred_check
          %p151 = pneg %p64
        $region18: #{tpu_custom_call.1} parent=15 // pred_check_branch
          %153 = sbr.rel (%p151) target = $region20
        $region19: #{tpu_custom_call.1} parent=15 // pred_region
          %s154 = sand.u32 %s54, 1
          %s155 = scalar_lea.sflag [#allocation3], %s154
          %s156 = sand.u32 %s54, 1
          %s157 = smul.addr %s156, 8
          %s158 = scalar_lea.vmem [#allocation2], %s157
          %s159 = sadd.s32 %s25, %s26
          %p160 = scmp.lt.s32.totalorder %s159, 0
          %s161 = scalar_select %p160, %s159, 0
          %163 = vsyncadd %s155, 0
          %s164 = smul.addr %s24, 4
          %s165 = sadd.s32 %s161, %s164
          %s166 = smul.addr %s165, 2
          %s167 = scalar_lea.hbm %s0, %s166
          %s168 = sshll.u32 %s167, 4
          %s169 = int_to_ptr.hbm [resolvable:$true] %s168
          %s170 = sshll.u32 %s158, 4
          %s171 = int_to_ptr.vmem [resolvable:$true] %s170
          %176 = dma.hbm_to_vmem [thread:$0]  %s169, 128, %s171, %s155, 32, 32, 2
        $region20: #{tpu_custom_call.1} parent=15 // pred_fallthru
          _
        // Predicated region
        $region21: #{tpu_custom_call.1} parent=15 // pred_check
          %p177 = pneg %p98
        $region22: #{tpu_custom_call.1} parent=15 // pred_check_branch
          %179 = sbr.rel (%p177) target = $region24
        $region23: #{tpu_custom_call.1} parent=15 // pred_region
          %s180 = sand.u32 %s88, 1
          %s181 = scalar_lea.sflag [#allocation6], %s180
          %s182 = sand.u32 %s88, 1
          %s183 = smul.addr %s182, 8
          %s184 = scalar_lea.vmem [#allocation5], %s183
          %s185 = sadd.s32 %s25, %s26
          %p186 = scmp.lt.s32.totalorder %s185, 0
          %s187 = scalar_select %p186, %s185, 0
          %189 = vsyncadd %s181, 0
          %s190 = smul.addr %s24, 4
          %s191 = sadd.s32 %s187, %s190
          %s192 = smul.addr %s191, 2
          %s193 = scalar_lea.hbm %s1, %s192
          %s194 = sshll.u32 %s193, 4
          %s195 = int_to_ptr.hbm [resolvable:$true] %s194
          %s196 = sshll.u32 %s184, 4
          %s197 = int_to_ptr.vmem [resolvable:$true] %s196
          %202 = dma.hbm_to_vmem [thread:$0]  %s195, 128, %s197, %s181, 32, 32, 2
        $region24: #{tpu_custom_call.1} parent=15 // pred_fallthru
          _
      $region16: #{tpu_custom_call.1} parent=5 // pred_fallthru
        _
      %p203 = scmp.le.s32.totalorder 1, %s17
      %p204 = scmp.lt.s32.totalorder %s17, 3
      %p205 = pnand %p203, %p204
      %p206 = pneg %p205
      // Predicated region
      $region25: #{tpu_custom_call.1} parent=5 // pred_check
        _
      $region26: #{tpu_custom_call.1} parent=5 // pred_check_branch
        %208 = sbr.rel (%p205) target = $region28
      $region27: #{tpu_custom_call.1} parent=5 // pred_region
        %s209 = ssub.s32 %s17, 1
        %s210 = sand.u32 %s57, 1
        %s211 = scalar_lea.sflag [#allocation3], %s210
        %s212 = sand.u32 %s57, 1
        %s213 = smul.addr %s212, 8
        %s214 = scalar_lea.vmem [#allocation2], %s213
        // Predicated region
        $region29: #{tpu_custom_call.1} parent=27 // pred_check
          %p215 = pneg %p70
        $region30: #{tpu_custom_call.1} parent=27 // pred_check_branch
          %217 = sbr.rel (%p215) target = $region32
        $region31: #{tpu_custom_call.1} parent=27 // pred_region
          %219 = dma.done %s211, 128
        $region32: #{tpu_custom_call.1} parent=27 // pred_fallthru
          _
        %s220 = sand.u32 %s91, 1
        %s221 = scalar_lea.sflag [#allocation6], %s220
        %s222 = sand.u32 %s91, 1
        %s223 = smul.addr %s222, 8
        %s224 = scalar_lea.vmem [#allocation5], %s223
        // Predicated region
        $region33: #{tpu_custom_call.1} parent=27 // pred_check
          %p225 = pneg %p104
        $region34: #{tpu_custom_call.1} parent=27 // pred_check_branch
          %227 = sbr.rel (%p225) target = $region36
        $region35: #{tpu_custom_call.1} parent=27 // pred_region
          %229 = dma.done %s221, 128
        $region36: #{tpu_custom_call.1} parent=27 // pred_fallthru
          _
        %s230 = sand.u32 %s57, 1
        %s231 = scalar_lea.sflag [#allocation3], %s230
        %s232 = sand.u32 %s57, 1
        %s233 = smul.addr %s232, 8
        %s234 = scalar_lea.vmem [#allocation2], %s233
        %p235 = pneg %p70
        %p236 = pneg %p67
        %s237 = sand.u32 %s91, 1
        %s238 = scalar_lea.sflag [#allocation6], %s237
        %s239 = sand.u32 %s91, 1
        %s240 = smul.addr %s239, 8
        %s241 = scalar_lea.vmem [#allocation5], %s240
        %p242 = pneg %p104
        %p243 = pneg %p101
        %p244 = pneg %p132
        %p245 = pneg %p129
        %s246 = sand.u32 %s119, 1
        %s247 = scalar_lea.sflag [#allocation4], %s246
        %s248 = sand.u32 %s119, 1
        %s249 = smul.addr %s248, 4
        %s250 = scalar_lea.vmem [#allocation7], %s249
        %s251 = sadd.s32 %s28, %s29
        %p252 = scmp.lt.s32.totalorder %s251, 0
        %s253 = scalar_select %p252, %s251, 0
        %s254 = sadd.s32 %s28, %s29
        %p255 = scmp.lt.s32.totalorder %s254, 0
        %s256 = scalar_select %p255, %s254, 0
        %p257 = scmp.eq.s32.totalorder %s29, 0
        // Predicated region
        $region37: #{tpu_custom_call.1} parent=27 // pred_check
          %p258 = pneg %p257
        $region38: #{tpu_custom_call.1} parent=27 // pred_check_branch
          %260 = sbr.rel (%p258) target = $region40
        $region39: #{tpu_custom_call.1} parent=27 // pred_region
          %261 = vst [vmem:[%s250] sm:$0xf] 0.0
        $region40: #{tpu_custom_call.1} parent=27 // pred_fallthru
          _
        %v262 = vld [vmem:[%s214] sm:$0x3]
        %v263 = vld [vmem:[%s214 + $0x2] sm:$0x3]
        %v264 = vld [vmem:[%s214 + $0x4] sm:$0x3]
        %v265 = vld [vmem:[%s214 + $0x6] sm:$0x3]
        %v266 = vld [vmem:[%s224] sm:$0x3]
        %v267 = vld [vmem:[%s224 + $0x2] sm:$0x3]
        %v268 = vld [vmem:[%s224 + $0x4] sm:$0x3]
        %v269 = vld [vmem:[%s224 + $0x6] sm:$0x3]
        %s270 = sadd.s32 %s28, %s29
        %v271 = vlaneseq
        %v272 = vshrl.u32 %v271, 7
        %s273 = smul.u32 %s270, 2
        %v274 = vstv %s273
        %v275 = vadd.s32 %v274, %v272
        %vm276 = vcmp.lt.s32.totalorder %v275, 2
        %vm277 = vcmask 1041408
        %v278 = vsel %vm277, %v262, -inf
        %v279 = vsel %vm277, %v263, -inf
        %v280 = vsel %vm277, %v264, -inf
        %v281 = vsel %vm277, %v265, -inf
        %v282 = vmax.f32 %v278, %v279
        %v283 = vmax.f32 %v280, %v281
        %v284 = vmax.f32 %v282, %v283
        %v285 = vsub.f32 %v262, %v284
        %v286 = vsub.f32 %v263, %v284
        %v287 = vsub.f32 %v264, %v284
        %v288 = vsub.f32 %v265, %v284
        %v289 = vmul.f32 %v285, 1.442695
        %v290 = vpow.pop %v289
        %v291 = vmul.f32 %v286, 1.442695
        %v292 = vpow.pop %v291
        %v293 = vmul.f32 %v287, 1.442695
        %v294 = vpow.pop %v293
        %v295 = vmul.f32 %v288, 1.442695
        %v296 = vpow.pop %v295
        %v297 = vsel %vm277, %v290, 0.0
        %v298 = vsel %vm277, %v292, 0.0
        %v299 = vadd.f32 %v297, %v298
        %v300 = vsel %vm277, %v294, 0.0
        %v301 = vadd.f32 %v299, %v300
        %v302 = vsel %vm277, %v296, 0.0
        %v303 = vadd.f32 %v301, %v302
        %v304 = vlog2.pop %v303
        %v305 = vmul.f32 %v304, 0.6931472
        %v306 = vadd.f32 %v305, %v284
        %vm307 = vcmp.ne.f32.partialorder %v266, -1.0
        %vm308 = vcmp.ne.f32.partialorder %v267, -1.0
        %vm309 = vcmp.ne.f32.partialorder %v268, -1.0
        %vm310 = vcmp.ne.f32.partialorder %v269, -1.0
        %v311 = vsel %vm276, 1, 0
        %vm312 = vcmp.eq.s32.totalorder %v311, 1
        %vm313 = vmand %vm307, %vm312
        %vm314 = vmand %vm308, %vm312
        %vm315 = vmand %vm309, %vm312
        %vm316 = vmand %vm310, %vm312
        %v317 = vsub.f32 %v306, %v262
        %v318 = vsub.f32 %v306, %v263
        %v319 = vsub.f32 %v306, %v264
        %v320 = vsub.f32 %v306, %v265
        %v321 = vmul.f32 %v266, %v317
        %v322 = vmul.f32 %v267, %v318
        %v323 = vmul.f32 %v268, %v319
        %v324 = vmul.f32 %v269, %v320
        %v325 = vsel %vm313, %v321, 0.0
        %v326 = vsel %vm314, %v322, 0.0
        %v327 = vsel %vm315, %v323, 0.0
        %v328 = vsel %vm316, %v324, 0.0
        %v329 = vld [vmem:[%s250] sm:$0x3]
        %v330 = vsel %vm277, %v325, 0.0
        %v331 = vsel %vm277, %v326, 0.0
        %v332 = vadd.f32 %v330, %v331
        %v333 = vsel %vm277, %v327, 0.0
        %v334 = vadd.f32 %v332, %v333
        %v335 = vsel %vm277, %v328, 0.0
        %v336 = vadd.f32 %v334, %v335
        %v337 = vadd.f32 %v329, %v336
        %338 = vst [vmem:[%s250] sm:$0x3] %v337
        %v339 = vld [vmem:[%s250 + $0x2] sm:$0x3]
        %v340 = vsel %vm313, 1, 0
        %v341 = vsel %vm314, 1, 0
        %v342 = vsel %vm315, 1, 0
        %v343 = vsel %vm316, 1, 0
        %v344 = vcvt.s32.f32 %v340
        %v345 = vcvt.s32.f32 %v341
        %v346 = vcvt.s32.f32 %v342
        %v347 = vcvt.s32.f32 %v343
        %v348 = vsel %vm277, %v344, 0.0
        %v349 = vsel %vm277, %v345, 0.0
        %v350 = vadd.f32 %v348, %v349
        %v351 = vsel %vm277, %v346, 0.0
        %v352 = vadd.f32 %v350, %v351
        %v353 = vsel %vm277, %v347, 0.0
        %v354 = vadd.f32 %v352, %v353
        %v355 = vadd.f32 %v339, %v354
        %356 = vst [vmem:[%s250 + $0x2] sm:$0x3] %v355
        %s357 = sand.u32 %s119, 1
        %s358 = scalar_lea.sflag [#allocation4], %s357
        %s359 = sand.u32 %s119, 1
        %s360 = smul.addr %s359, 4
        %s361 = scalar_lea.vmem [#allocation7], %s360
        // Predicated region
        $region41: #{tpu_custom_call.1} parent=27 // pred_check
          %p362 = pneg %p129
        $region42: #{tpu_custom_call.1} parent=27 // pred_check_branch
          %364 = sbr.rel (%p362) target = $region44
        $region43: #{tpu_custom_call.1} parent=27 // pred_region
          %366 = vsyncadd %s358, 0
          %s367 = sadd.s32 %s28, %s27
          %s368 = smul.addr %s367, 4
          %s369 = scalar_lea.hbm %s2, %s368
          %s371 = sshll.u32 %s361, 4
          %s372 = int_to_ptr.vmem [resolvable:$true] %s371
          %s373 = sshll.u32 %s369, 4
          %s374 = int_to_ptr.hbm [resolvable:$true] %s373
          %376 = dma.vmem_to_hbm [thread:$0]  %s372, 64, %s374, %s358
        $region44: #{tpu_custom_call.1} parent=27 // pred_fallthru
          _
      $region28: #{tpu_custom_call.1} parent=5 // pred_fallthru
        _
      %p377 = scmp.le.s32.totalorder 2, %s17
      // Predicated region
      $region45: #{tpu_custom_call.1} parent=5 // pred_check
        %p378 = pneg %p377
      $region46: #{tpu_custom_call.1} parent=5 // pred_check_branch
        %380 = sbr.rel (%p378) target = $region48
      $region47: #{tpu_custom_call.1} parent=5 // pred_region
        %s381 = ssub.s32 %s17, 2
        // Predicated region
        $region49: #{tpu_custom_call.1} parent=47 // pred_check
          %p382 = pneg %p135
        $region50: #{tpu_custom_call.1} parent=47 // pred_check_branch
          %384 = sbr.rel (%p382) target = $region52
        $region51: #{tpu_custom_call.1} parent=47 // pred_region
          %s385 = sand.u32 %s120, 1
          %s386 = scalar_lea.sflag [#allocation4], %s385
          %s387 = sand.u32 %s120, 1
          %s388 = smul.addr %s387, 4
          %s389 = scalar_lea.vmem [#allocation7], %s388
          %391 = dma.done %s386, 64
        $region52: #{tpu_custom_call.1} parent=47 // pred_fallthru
          _
      $region48: #{tpu_custom_call.1} parent=5 // pred_fallthru
        _
    $region6: #{tpu_custom_call.1} parent=1 // loop_footer
      %s21 = sadd.s32 1, %s17
    $region7: #{tpu_custom_call.1} parent=1 // loop_footer_branch
      %16 = sbr.rel target = $region3
    $region8: #{tpu_custom_call.1} parent=1 // loop_exit
      _
    %392 = vsyncpa [#allocation3], 1
    %s393 = scalar_lea.sflag [#allocation3], 1
    %394 = vsyncpa %s393, 1
    %395 = vsyncpa [#allocation6], 1
    %s396 = scalar_lea.sflag [#allocation6], 1
    %397 = vsyncpa %s396, 1
    %398 = vsyncpa [#allocation4], 1
    %s399 = scalar_lea.sflag [#allocation4], 1
    %400 = vsyncpa %s399, 1

</llo_original>
